<compile_context>
chip_gen: v5e
topology: v5e:2x2
jax: 0.10.0
libtpu: 0.0.40
codegen_flags: <defaults>
</compile_context>

<pallas_src>
import functools

import jax
import jax.numpy as jnp
from jax.experimental import pallas as pl
from jax.experimental.pallas import tpu as pltpu


def _round_up(x, m):
    return (x + m - 1) // m * m


def _mlp_kernel(ids_ref, tw1_ref, b1_ref, w2_ref, b2_ref, out_ref, counts_ref,
                *, inv_seq_len):
    """Grid = (batch_tiles, seq_tiles); seq (last axis) is the reduction axis.

    ids_ref:    (TB, TS)   int32 token ids (padded slots hold -1 -> never match)
    tw1_ref:    (Vp, Hp)   folded (embedding_table @ w1), param_dtype
    b1_ref:     (1, Hp)    w2_ref: (Hp, Tp)    b2_ref: (1, Tp)
    out_ref:    (TB, Tp)   float32
    counts_ref: (TB, Vp)   int32 VMEM accumulator of per-row token counts
    """
    s_step = pl.program_id(1)

    @pl.when(s_step == 0)
    def _init():
        counts_ref[...] = jnp.zeros_like(counts_ref)

    # ---- counts phase (steady state, VALU) --------------------------------
    ids = ids_ref[...]                               # (TB, TS) int32
    vp = counts_ref.shape[1]
    # Vocab on the lane axis, seq on sublanes: the axis=1 reduce stays on the
    # VALU and the (TB, Vp) result is already lane-major like counts_ref.
    vocab_iota = jax.lax.broadcasted_iota(jnp.int32, (1, 1, vp), 2)
    onehot = ids[:, :, None] == vocab_iota           # (TB, TS, Vp) bool, via broadcast
    counts_ref[...] += jnp.sum(onehot, axis=1)       # bool -> int32 reduce (no f32 pass)

    # ---- epilogue (runs once per batch tile) -------------------------------
    @pl.when(s_step == pl.num_programs(1) - 1)
    def _finalize():
        # mean of gathered rows == (counts / S) @ table; table already folded
        # into w1, so one matmul gives linear1 applied to the mean context.
        mean_w = counts_ref[...].astype(jnp.float32) * inv_seq_len          # (TB, Vp) f32
        h = jnp.dot(mean_w, tw1_ref[...].astype(jnp.float32),
                    preferred_element_type=jnp.float32)                     # (TB, Hp)
        h = jnp.maximum(h + b1_ref[...].astype(jnp.float32), 0.0)
        out = jnp.dot(h, w2_ref[...].astype(jnp.float32),
                      preferred_element_type=jnp.float32)                   # (TB, Tp)
        out_ref[...] = (out + b2_ref[...].astype(jnp.float32)).astype(out_ref.dtype)


def mlp_forward(model_input, embedding_table, w1, b1, w2, b2,
                *, param_dtype=jnp.bfloat16):
    """model_input: (B, S) int token ids.  Returns (B, n_tags) float32 logits."""
    B, S = model_input.shape
    V, E = embedding_table.shape
    H = w1.shape[1]
    T = w2.shape[1]

    # ---- fold embedding table into linear1 (exact; computed in f32) --------
    table_w1 = embedding_table.astype(jnp.float32) @ w1.astype(jnp.float32)  # (V, H)

    # ---- lane / MXU friendly padding ----------------------------------------
    V_pad = _round_up(V, 128)
    H_pad = _round_up(H, 128)
    T_pad = _round_up(T, 128)

    # ---- tiling --------------------------------------------------------------
    # >= 2 batch tiles when B allows it so the "parallel" axis can span both
    # TensorCores on v7x; rows stay multiples of 8 (sublanes).
    TB = min(128, _round_up(max((B + 1) // 2, 1), 8))
    B_pad = _round_up(B, TB)
    S_pad = _round_up(S, 128)                       # lane-aligned id blocks
    if S_pad <= 256:
        TS = S_pad
    else:                                           # cap reduction tile: bounds the
        TS = 256 if S_pad % 256 == 0 else 128       # per-step one-hot intermediates
    grid = (B_pad // TB, S_pad // TS)

    # ---- host-side packing ---------------------------------------------------
    ids = jnp.pad(model_input.astype(jnp.int32),
                  ((0, B_pad - B), (0, S_pad - S)), constant_values=-1)
    tw1 = jnp.pad(table_w1, ((0, V_pad - V), (0, H_pad - H))).astype(param_dtype)
    b1p = jnp.pad(b1.astype(jnp.float32), (0, H_pad - H)).reshape(1, H_pad).astype(param_dtype)
    w2p = jnp.pad(w2.astype(jnp.float32),
                  ((0, H_pad - H), (0, T_pad - T))).astype(param_dtype)
    b2p = jnp.pad(b2.astype(jnp.float32), (0, T_pad - T)).reshape(1, T_pad).astype(param_dtype)

    itemsize = jnp.dtype(param_dtype).itemsize
    param_bytes = (V_pad * H_pad + H_pad * T_pad + H_pad + T_pad) * itemsize
    if 2 * param_bytes > 24 * 1024 * 1024:
        # TODO(synk): resident-table path only; large vocab needs a DMA gather.
        raise NotImplementedError("vocab too large for the resident folded-table path")

    # ---- cost / VMEM hints ----------------------------------------------------
    flops = (2 * B_pad * S_pad * V_pad                        # one-hot counting
             + 2 * B_pad * (V_pad * H_pad + H_pad * T_pad))   # epilogue matmuls
    bytes_accessed = B_pad * S_pad * 4 + param_bytes + B_pad * T_pad * 4
    cost = pl.CostEstimate(flops=flops, transcendentals=0,
                           bytes_accessed=bytes_accessed)

    vmem_est = (2 * TB * TS * 4            # ids tile (double-buffered)
                + 2 * param_bytes          # resident params (double-buffered)
                + 2 * TB * T_pad * 4       # output tile (double-buffered)
                + TB * V_pad * 4           # counts scratch
                + TB * TS * V_pad * 4)     # conservative: compare/one-hot intermediates
    vmem_limit = max(int(vmem_est) + (2 << 20), 8 << 20)
    vmem_limit = min(vmem_limit, 48 << 20)  # headroom under v7x's 64 MiB physical VMEM

    out_padded = pl.pallas_call(
        functools.partial(_mlp_kernel, inv_seq_len=1.0 / S),
        out_shape=jax.ShapeDtypeStruct((B_pad, T_pad), jnp.float32),
        grid_spec=pltpu.PrefetchScalarGridSpec(
            num_scalar_prefetch=0,
            grid=grid,
            in_specs=[
                pl.BlockSpec((TB, TS), lambda b, s: (b, s)),        # token ids
                pl.BlockSpec((V_pad, H_pad), lambda b, s: (0, 0)),  # folded table @ w1
                pl.BlockSpec((1, H_pad), lambda b, s: (0, 0)),      # b1
                pl.BlockSpec((H_pad, T_pad), lambda b, s: (0, 0)),  # w2
                pl.BlockSpec((1, T_pad), lambda b, s: (0, 0)),      # b2
            ],
            out_specs=pl.BlockSpec((TB, T_pad), lambda b, s: (b, 0)),
            scratch_shapes=[pltpu.VMEM((TB, V_pad), jnp.int32)],
        ),
        compiler_params=pltpu.CompilerParams(
            dimension_semantics=("parallel", "arbitrary"),
            vmem_limit_bytes=int(vmem_limit),
        ),
        cost_estimate=cost,
    )(ids, tw1, b1p, w2p, b2p)

    return out_padded[:B, :T]


if __name__ == "__main__":
    # Small shapes consistent with the module's forward.
    vocab_size = 64
    embedding_dim = 32
    hidden_dim = 32
    n_tags = 8
    batch = 2
    seq = 8

    key = jax.random.PRNGKey(0)
    k_emb, k_w1, k_b1, k_w2, k_b2, k_in = jax.random.split(key, 6)

    embedding_weights = jax.random.normal(k_emb, (vocab_size, embedding_dim), jnp.float32)
    w1 = jax.random.normal(k_w1, (embedding_dim, hidden_dim), jnp.float32) * 0.1
    b1 = jax.random.normal(k_b1, (hidden_dim,), jnp.float32) * 0.1
    w2 = jax.random.normal(k_w2, (hidden_dim, n_tags), jnp.float32) * 0.1
    b2 = jax.random.normal(k_b2, (n_tags,), jnp.float32) * 0.1

    model_input = jax.random.randint(k_in, (batch, seq), 0, vocab_size, jnp.int32)

    out = mlp_forward(model_input, embedding_weights, w1, b1, w2, b2)
    out = jax.block_until_ready(out)

    # Pure-JAX f32 reference (same semantics as the PyTorch forward).
    emb = jnp.take(embedding_weights, model_input, axis=0)
    ctx = jnp.mean(emb, axis=1)
    ref = jnp.maximum(ctx @ w1 + b1, 0.0) @ w2 + b2

    assert out.shape == (batch, n_tags)
    # Kernel stores params in bf16 (all accumulation in f32) -> loose tolerance vs f32 ref.
    assert jnp.allclose(out, ref, atol=2e-2, rtol=2e-2), (out, ref)

    print("KERNEL_OK")
</pallas_src>

<mosaic_0001>
module attributes {stable_mosaic.version = 11 : i64} {
  func.func @_mlp_kernel(%arg0: i32, %arg1: i32, %arg2: memref<8x128xi32, #tpu.memory_space<vmem>>, %arg3: memref<128x128xbf16, #tpu.memory_space<vmem>>, %arg4: memref<1x128xbf16, #tpu.memory_space<vmem>>, %arg5: memref<128x128xbf16, #tpu.memory_space<vmem>>, %arg6: memref<1x128xbf16, #tpu.memory_space<vmem>>, %arg7: memref<8x128xf32, #tpu.memory_space<vmem>>, %arg8: memref<8x128xi32, #tpu.memory_space<vmem>>) attributes {dimension_semantics = [#tpu.dimension_semantics<parallel>, #tpu.dimension_semantics<arbitrary>], iteration_bounds = array<i64: 1, 1>, scalar_prefetch = 0 : i64, scratch_operands = 1 : i64, tpu.core_type = #tpu.core_type<tc>, window_params = [{transform_indices = @transform_0, window_bounds = array<i64: 8, 128>}, {pipeline_mode = #tpu.pipeline_mode<synchronous>, transform_indices = @transform_1, window_bounds = array<i64: 128, 128>}, {pipeline_mode = #tpu.pipeline_mode<synchronous>, transform_indices = @transform_2, window_bounds = array<i64: 1, 128>}, {pipeline_mode = #tpu.pipeline_mode<synchronous>, transform_indices = @transform_3, window_bounds = array<i64: 128, 128>}, {pipeline_mode = #tpu.pipeline_mode<synchronous>, transform_indices = @transform_4, window_bounds = array<i64: 1, 128>}, {transform_indices = @transform_5, window_bounds = array<i64: 8, 128>}]} {
    %c0_i32 = arith.constant 0 : i32
    %0 = arith.cmpi eq, %arg1, %c0_i32 : i32
    %1 = arith.extui %0 : i1 to i32
    %c0_i32_0 = arith.constant 0 : i32
    %2 = arith.cmpi ne, %1, %c0_i32_0 : i32
    scf.if %2 {
      %c0_i32_8 = arith.constant 0 : i32
      %17 = vector.broadcast %c0_i32_8 : i32 to vector<8x128xi32>
      %c0_9 = arith.constant 0 : index
      %c0_10 = arith.constant 0 : index
      %18 = vector.load %arg8[%c0_9, %c0_10] : memref<8x128xi32, #tpu.memory_space<vmem>>, vector<8x128xi32>
      tpu.vector_store %arg8[%c0_9, %c0_10], %17 {strides = array<i32>} : memref<8x128xi32, #tpu.memory_space<vmem>>, vector<8x128xi32>,
    } else {
    }
    %c0 = arith.constant 0 : index
    %c0_1 = arith.constant 0 : index
    %3 = vector.load %arg2[%c0, %c0_1] : memref<8x128xi32, #tpu.memory_space<vmem>>, vector<8x128xi32>
    %4 = tpu.iota {dimensions = array<i32: 2>} : vector<1x1x128xi32>
    %5 = vector.shape_cast %3 : vector<8x128xi32> to vector<8x128x1xi32>
    %6 = vector.broadcast %5 : vector<8x128x1xi32> to vector<8x128x128xi32>
    %7 = vector.broadcast %4 : vector<1x1x128xi32> to vector<8x128x128xi32>
    %8 = arith.cmpi eq, %6, %7 : vector<8x128x128xi32>
    %c0_2 = arith.constant 0 : index
    %c0_3 = arith.constant 0 : index
    %9 = vector.load %arg8[%c0_2, %c0_3] : memref<8x128xi32, #tpu.memory_space<vmem>>, vector<8x128xi32>
    %10 = arith.extui %8 : vector<8x128x128xi1> to vector<8x128x128xi32>
    %cst = arith.constant dense<0> : vector<8x128xi32>
    %11 = vector.multi_reduction <add>, %10, %cst [1] : vector<8x128x128xi32> to vector<8x128xi32>
    %12 = arith.addi %9, %11 : vector<8x128xi32>
    %c0_4 = arith.constant 0 : index
    %c0_5 = arith.constant 0 : index
    %13 = vector.load %arg8[%c0_4, %c0_5] : memref<8x128xi32, #tpu.memory_space<vmem>>, vector<8x128xi32>
    tpu.vector_store %arg8[%c0_4, %c0_5], %12 {strides = array<i32>} : memref<8x128xi32, #tpu.memory_space<vmem>>, vector<8x128xi32>,
    %c0_i32_6 = arith.constant 0 : i32
    %14 = arith.cmpi eq, %arg1, %c0_i32_6 : i32
    %15 = arith.extui %14 : i1 to i32
    %c0_i32_7 = arith.constant 0 : i32
    %16 = arith.cmpi ne, %15, %c0_i32_7 : i32
    scf.if %16 {
      %c0_8 = arith.constant 0 : index
      %c0_9 = arith.constant 0 : index
      %17 = vector.load %arg8[%c0_8, %c0_9] : memref<8x128xi32, #tpu.memory_space<vmem>>, vector<8x128xi32>
      %18 = arith.sitofp %17 : vector<8x128xi32> to vector<8x128xf32>
      %cst_10 = arith.constant 1.250000e-01 : f32
      %19 = vector.broadcast %cst_10 : f32 to vector<8x128xf32>
      %20 = arith.mulf %18, %19 : vector<8x128xf32>
      %c0_11 = arith.constant 0 : index
      %c0_12 = arith.constant 0 : index
      %21 = vector.load %arg3[%c0_11, %c0_12] : memref<128x128xbf16, #tpu.memory_space<vmem>>, vector<128x128xbf16>
      %22 = arith.extf %21 : vector<128x128xbf16> to vector<128x128xf32>
      %cst_13 = arith.constant dense<0.000000e+00> : vector<8x128xf32>
      %23 = tpu.matmul %20, %22, %cst_13 {dimension_numbers = #tpu.dot_dimension_numbers<[1], [0], [0], [1], [0, 0, 1, 1], [], []>} : vector<8x128xf32>, vector<128x128xf32>, vector<8x128xf32> -> vector<8x128xf32>
      %c0_14 = arith.constant 0 : index
      %c0_15 = arith.constant 0 : index
      %24 = vector.load %arg4[%c0_14, %c0_15] : memref<1x128xbf16, #tpu.memory_space<vmem>>, vector<1x128xbf16>
      %25 = arith.extf %24 : vector<1x128xbf16> to vector<1x128xf32>
      %26 = vector.broadcast %25 : vector<1x128xf32> to vector<8x128xf32>
      %27 = arith.addf %23, %26 : vector<8x128xf32>
      %cst_16 = arith.constant 0.000000e+00 : f32
      %28 = vector.broadcast %cst_16 : f32 to vector<8x128xf32>
      %29 = arith.maximumf %27, %28 : vector<8x128xf32>
      %c0_17 = arith.constant 0 : index
      %c0_18 = arith.constant 0 : index
      %30 = vector.load %arg5[%c0_17, %c0_18] : memref<128x128xbf16, #tpu.memory_space<vmem>>, vector<128x128xbf16>
      %31 = arith.extf %30 : vector<128x128xbf16> to vector<128x128xf32>
      %cst_19 = arith.constant dense<0.000000e+00> : vector<8x128xf32>
      %32 = tpu.matmul %29, %31, %cst_19 {dimension_numbers = #tpu.dot_dimension_numbers<[1], [0], [0], [1], [0, 0, 1, 1], [], []>} : vector<8x128xf32>, vector<128x128xf32>, vector<8x128xf32> -> vector<8x128xf32>
      %c0_20 = arith.constant 0 : index
      %c0_21 = arith.constant 0 : index
      %33 = vector.load %arg6[%c0_20, %c0_21] : memref<1x128xbf16, #tpu.memory_space<vmem>>, vector<1x128xbf16>
      %34 = arith.extf %33 : vector<1x128xbf16> to vector<1x128xf32>
      %35 = vector.broadcast %34 : vector<1x128xf32> to vector<8x128xf32>
      %36 = arith.addf %32, %35 : vector<8x128xf32>
      %c0_22 = arith.constant 0 : index
      %c0_23 = arith.constant 0 : index
      %37 = vector.load %arg7[%c0_22, %c0_23] : memref<8x128xf32, #tpu.memory_space<vmem>>, vector<8x128xf32>
      tpu.vector_store %arg7[%c0_22, %c0_23], %36 {strides = array<i32>} : memref<8x128xf32, #tpu.memory_space<vmem>>, vector<8x128xf32>,
    } else {
    }
    return
  }
  func.func @transform_0(%arg0: i32, %arg1: i32) -> (i32, i32) {
    %c0_i32 = arith.constant 0 : i32
    return %arg0, %arg1 : i32, i32
  }
  func.func @transform_1(%arg0: i32, %arg1: i32) -> (i32, i32) {
    %c0_i32 = arith.constant 0 : i32
    %c0_i32_0 = arith.constant 0 : i32
    %c0_i32_1 = arith.constant 0 : i32
    return %c0_i32, %c0_i32_0 : i32, i32
  }
  func.func @transform_2(%arg0: i32, %arg1: i32) -> (i32, i32) {
    %c0_i32 = arith.constant 0 : i32
    %c0_i32_0 = arith.constant 0 : i32
    %c0_i32_1 = arith.constant 0 : i32
    return %c0_i32, %c0_i32_0 : i32, i32
  }
  func.func @transform_3(%arg0: i32, %arg1: i32) -> (i32, i32) {
    %c0_i32 = arith.constant 0 : i32
    %c0_i32_0 = arith.constant 0 : i32
    %c0_i32_1 = arith.constant 0 : i32
    return %c0_i32, %c0_i32_0 : i32, i32
  }
  func.func @transform_4(%arg0: i32, %arg1: i32) -> (i32, i32) {
    %c0_i32 = arith.constant 0 : i32
    %c0_i32_0 = arith.constant 0 : i32
    %c0_i32_1 = arith.constant 0 : i32
    return %c0_i32, %c0_i32_0 : i32, i32
  }
  func.func @transform_5(%arg0: i32, %arg1: i32) -> (i32, i32) {
    %c0_i32 = arith.constant 0 : i32
    %c0_i32_0 = arith.constant 0 : i32
    return %arg0, %c0_i32 : i32, i32
  }
}

</mosaic_0001>

<llo_original>
// kernel: tpu_custom_call.1
$region0: #{tpu_custom_call.1}
  #allocation0 [shape = 'u32[]', space=smem, size = 0x4, offset = 0x4, fixed_abs, tag = 'smem constant byte address 0x4 - core index']
  #allocation1 [shape = 'u32[72,128]{1,0:T(1,128)}', space=vmem, size = 0x9000, scoped, tag = 'internal scratch']
  #allocation2 [shape = 's32[8,128]{1,0:T(8,128)}', space=vmem, size = 0x1000, scoped, tag = 'scratch operand']
  %s0 = inlined_call_operand.hbm [shape: s32[8,128], index: 0, kind: input, shape index: {}]
  %s1 = inlined_call_operand.hbm [shape: bf16[128,128], index: 1, kind: input, shape index: {}]
  %s2 = inlined_call_operand.vmem [shape: bf16[1,128], index: 2, kind: input, shape index: {}]
  %s3 = inlined_call_operand.hbm [shape: bf16[128,128], index: 3, kind: input, shape index: {}]
  %s4 = inlined_call_operand.vmem [shape: bf16[1,128], index: 4, kind: input, shape index: {}]
  %s5 = inlined_call_operand.hbm [shape: f32[8,128], index: 5, kind: output, shape index: {}]
  %s6 = sld [smem:[#allocation0]]
  $region50: #{tpu_custom_call.1} parent=0
    _
  %s8 = ssub.s32 1, %s6
  %s9 = scalar_select 0, %s8, %s6
  $region1: #{tpu_custom_call.1} parent=0
    #allocation3 [shape = 'u8[4096]{0}', space=vmem, size = 0x1000, scoped, tag = 'input window, operand 0, single buffered']
    #allocation4 [shape = 's32[1]{0}', space=sflag, size = 0x4, scoped, tag = 'scoped memory for tpu_custom_call.1']
    #allocation5 [shape = 's32[1]{0}', space=sflag, size = 0x4, scoped, tag = 'scoped memory for tpu_custom_call.1']
    #allocation6 [shape = 'u8[32768]{0}', space=vmem, size = 0x8000, scoped, tag = 'input window, operand 1, single buffered']
    #allocation7 [shape = 's32[1]{0}', space=sflag, size = 0x4, scoped, tag = 'scoped memory for tpu_custom_call.1']
    #allocation8 [shape = 'u8[32768]{0}', space=vmem, size = 0x8000, scoped, tag = 'input window, operand 3, single buffered']
    #allocation9 [shape = 'u8[4096]{0}', space=vmem, size = 0x1000, scoped, tag = 'output window, operand 0, single buffered']
    %10 = vsyncpa [#allocation4], 0
    %11 = vsyncpa [#allocation7], 0
    %12 = vsyncpa [#allocation5], 0
    // Predicated region
    $region2: #{tpu_custom_call.1} parent=1 // pred_check
      _
    $region3: #{tpu_custom_call.1} parent=1 // pred_check_branch
      %14 = sbr.rel (0) target = $region5
    $region4: #{tpu_custom_call.1} parent=1 // pred_region
      %16 = vsyncadd [#allocation4], 0
      %s18 = sshll.u32 %s0, 4
      %s19 = int_to_ptr.hbm [resolvable:$true] %s18
      %s20 = sshll.u32 [#allocation3], 4
      %s21 = int_to_ptr.vmem [resolvable:$true] %s20
      %23 = dma.hbm_to_vmem [thread:$0]  %s19, 128, %s21, [#allocation4]
    $region5: #{tpu_custom_call.1} parent=1 // pred_fallthru
      _
    // Predicated region
    $region6: #{tpu_custom_call.1} parent=1 // pred_check
      _
    $region7: #{tpu_custom_call.1} parent=1 // pred_check_branch
      %25 = sbr.rel (0) target = $region9
    $region8: #{tpu_custom_call.1} parent=1 // pred_region
      %27 = vsyncadd [#allocation7], 0
      %s28 = sshll.u32 %s1, 4
      %s29 = int_to_ptr.hbm [resolvable:$true] %s28
      %s30 = sshll.u32 [#allocation6], 4
      %s31 = int_to_ptr.vmem [resolvable:$true] %s30
      %36 = dma.hbm_to_vmem [thread:$0]  %s29, 1024, %s31, [#allocation7], 64, 64, 4
    $region9: #{tpu_custom_call.1} parent=1 // pred_fallthru
      _
    // Predicated region
    $region10: #{tpu_custom_call.1} parent=1 // pred_check
      _
    $region11: #{tpu_custom_call.1} parent=1 // pred_check_branch
      %38 = sbr.rel (0) target = $region13
    $region12: #{tpu_custom_call.1} parent=1 // pred_region
      _
    $region13: #{tpu_custom_call.1} parent=1 // pred_fallthru
      _
    // Predicated region
    $region14: #{tpu_custom_call.1} parent=1 // pred_check
      _
    $region15: #{tpu_custom_call.1} parent=1 // pred_check_branch
      %40 = sbr.rel (0) target = $region17
    $region16: #{tpu_custom_call.1} parent=1 // pred_region
      %42 = vsyncadd [#allocation7], 0
      %s43 = sshll.u32 %s3, 4
      %s44 = int_to_ptr.hbm [resolvable:$true] %s43
      %s45 = sshll.u32 [#allocation8], 4
      %s46 = int_to_ptr.vmem [resolvable:$true] %s45
      %51 = dma.hbm_to_vmem [thread:$0]  %s44, 1024, %s46, [#allocation7], 64, 64, 4
    $region17: #{tpu_custom_call.1} parent=1 // pred_fallthru
      _
    // Predicated region
    $region18: #{tpu_custom_call.1} parent=1 // pred_check
      _
    $region19: #{tpu_custom_call.1} parent=1 // pred_check_branch
      %53 = sbr.rel (0) target = $region21
    $region20: #{tpu_custom_call.1} parent=1 // pred_region
      _
    $region21: #{tpu_custom_call.1} parent=1 // pred_fallthru
      _
    // Predicated region
    $region22: #{tpu_custom_call.1} parent=1 // pred_check
      _
    $region23: #{tpu_custom_call.1} parent=1 // pred_check_branch
      %55 = sbr.rel (0) target = $region25
    $region24: #{tpu_custom_call.1} parent=1 // pred_region
      %57 = dma.done [#allocation4], 128
    $region25: #{tpu_custom_call.1} parent=1 // pred_fallthru
      _
    // Predicated region
    $region26: #{tpu_custom_call.1} parent=1 // pred_check
      _
    $region27: #{tpu_custom_call.1} parent=1 // pred_check_branch
      %59 = sbr.rel (0) target = $region29
    $region28: #{tpu_custom_call.1} parent=1 // pred_region
      %61 = dma.done [#allocation7], 1024
    $region29: #{tpu_custom_call.1} parent=1 // pred_fallthru
      _
    // Predicated region
    $region30: #{tpu_custom_call.1} parent=1 // pred_check
      _
    $region31: #{tpu_custom_call.1} parent=1 // pred_check_branch
      %63 = sbr.rel (0) target = $region33
    $region32: #{tpu_custom_call.1} parent=1 // pred_region
      %65 = dma.done [#allocation7], 1024
    $region33: #{tpu_custom_call.1} parent=1 // pred_fallthru
      _
    %p66 = scmp.eq.s32.totalorder 0, 0
    // Predicated region
    $region34: #{tpu_custom_call.1} parent=1 // pred_check
      %p67 = pneg %p66
    $region35: #{tpu_custom_call.1} parent=1 // pred_check_branch
      %69 = sbr.rel (%p67) target = $region37
    $region36: #{tpu_custom_call.1} parent=1 // pred_region
      %70 = vst [vmem:[#allocation2] sm:$0xff] 0
    $region37: #{tpu_custom_call.1} parent=1 // pred_fallthru
      _
    %v71 = vld [vmem:[#allocation3] sm:$0xff]
    %v72 = vlaneseq
    %v73 = vand.u32 %v72, 127
    %v74 = vperm.slane %v71, 0
    %v75 = vlaneseq
    %v76 = vshrl.u32 %v75, 7
    %78 = vset.pattern.permute.xlu0 %v76
    %79 = vperm.xlu0 %78, %v74
    %v80 = vpop.permute.xlu0 %79
    %v81 = vlaneseq
    %v82 = vshrl.u32 %v81, 7
    %v83 = vadd.s32 %v82, 8
    %84 = vset.pattern.permute.xlu0 %v83
    %85 = vperm.xlu0 %84, %v74
    %v86 = vpop.permute.xlu0 %85
    %v87 = vlaneseq
    %v88 = vshrl.u32 %v87, 7
    %v89 = vadd.s32 %v88, 16
    %90 = vset.pattern.permute.xlu0 %v89
    %91 = vperm.xlu0 %90, %v74
    %v92 = vpop.permute.xlu0 %91
    %v93 = vlaneseq
    %v94 = vshrl.u32 %v93, 7
    %v95 = vadd.s32 %v94, 24
    %96 = vset.pattern.permute.xlu0 %v95
    %97 = vperm.xlu0 %96, %v74
    %v98 = vpop.permute.xlu0 %97
    %v99 = vlaneseq
    %v100 = vshrl.u32 %v99, 7
    %v101 = vadd.s32 %v100, 32
    %102 = vset.pattern.permute.xlu0 %v101
    %103 = vperm.xlu0 %102, %v74
    %v104 = vpop.permute.xlu0 %103
    %v105 = vlaneseq
    %v106 = vshrl.u32 %v105, 7
    %v107 = vadd.s32 %v106, 40
    %108 = vset.pattern.permute.xlu0 %v107
    %109 = vperm.xlu0 %108, %v74
    %v110 = vpop.permute.xlu0 %109
    %v111 = vlaneseq
    %v112 = vshrl.u32 %v111, 7
    %v113 = vadd.s32 %v112, 48
    %114 = vset.pattern.permute.xlu0 %v113
    %115 = vperm.xlu0 %114, %v74
    %v116 = vpop.permute.xlu0 %115
    %v117 = vlaneseq
    %v118 = vshrl.u32 %v117, 7
    %v119 = vadd.s32 %v118, 56
    %120 = vset.pattern.permute.xlu0 %v119
    %121 = vperm.xlu0 %120, %v74
    %v122 = vpop.permute.xlu0 %121
    %v123 = vlaneseq
    %v124 = vshrl.u32 %v123, 7
    %v125 = vadd.s32 %v124, 64
    %126 = vset.pattern.permute.xlu0 %v125
    %127 = vperm.xlu0 %126, %v74
    %v128 = vpop.permute.xlu0 %127
    %v129 = vlaneseq
    %v130 = vshrl.u32 %v129, 7
    %v131 = vadd.s32 %v130, 72
    %132 = vset.pattern.permute.xlu0 %v131
    %133 = vperm.xlu0 %132, %v74
    %v134 = vpop.permute.xlu0 %133
    %v135 = vlaneseq
    %v136 = vshrl.u32 %v135, 7
    %v137 = vadd.s32 %v136, 80
    %138 = vset.pattern.permute.xlu0 %v137
    %139 = vperm.xlu0 %138, %v74
    %v140 = vpop.permute.xlu0 %139
    %v141 = vlaneseq
    %v142 = vshrl.u32 %v141, 7
    %v143 = vadd.s32 %v142, 88
    %144 = vset.pattern.permute.xlu0 %v143
    %145 = vperm.xlu0 %144, %v74
    %v146 = vpop.permute.xlu0 %145
    %v147 = vlaneseq
    %v148 = vshrl.u32 %v147, 7
    %v149 = vadd.s32 %v148, 96
    %150 = vset.pattern.permute.xlu0 %v149
    %151 = vperm.xlu0 %150, %v74
    %v152 = vpop.permute.xlu0 %151
    %v153 = vlaneseq
    %v154 = vshrl.u32 %v153, 7
    %v155 = vadd.s32 %v154, 104
    %156 = vset.pattern.permute.xlu0 %v155
    %157 = vperm.xlu0 %156, %v74
    %v158 = vpop.permute.xlu0 %157
    %v159 = vlaneseq
    %v160 = vshrl.u32 %v159, 7
    %v161 = vadd.s32 %v160, 112
    %162 = vset.pattern.permute.xlu0 %v161
    %163 = vperm.xlu0 %162, %v74
    %v164 = vpop.permute.xlu0 %163
    %v165 = vlaneseq
    %v166 = vshrl.u32 %v165, 7
    %v167 = vadd.s32 %v166, 120
    %168 = vset.pattern.permute.xlu0 %v167
    %169 = vperm.xlu0 %168, %v74
    %v170 = vpop.permute.xlu0 %169
    %v171 = vperm.slane %v71, 1
    %v172 = vlaneseq
    %v173 = vshrl.u32 %v172, 7
    %175 = vset.pattern.permute.xlu0 %v173
    %176 = vperm.xlu0 %175, %v171
    %v177 = vpop.permute.xlu0 %176
    %v178 = vlaneseq
    %v179 = vshrl.u32 %v178, 7
    %v180 = vadd.s32 %v179, 8
    %181 = vset.pattern.permute.xlu0 %v180
    %182 = vperm.xlu0 %181, %v171
    %v183 = vpop.permute.xlu0 %182
    %v184 = vlaneseq
    %v185 = vshrl.u32 %v184, 7
    %v186 = vadd.s32 %v185, 16
    %187 = vset.pattern.permute.xlu0 %v186
    %188 = vperm.xlu0 %187, %v171
    %v189 = vpop.permute.xlu0 %188
    %v190 = vlaneseq
    %v191 = vshrl.u32 %v190, 7
    %v192 = vadd.s32 %v191, 24
    %193 = vset.pattern.permute.xlu0 %v192
    %194 = vperm.xlu0 %193, %v171
    %v195 = vpop.permute.xlu0 %194
    %v196 = vlaneseq
    %v197 = vshrl.u32 %v196, 7
    %v198 = vadd.s32 %v197, 32
    %199 = vset.pattern.permute.xlu0 %v198
    %200 = vperm.xlu0 %199, %v171
    %v201 = vpop.permute.xlu0 %200
    %v202 = vlaneseq
    %v203 = vshrl.u32 %v202, 7
    %v204 = vadd.s32 %v203, 40
    %205 = vset.pattern.permute.xlu0 %v204
    %206 = vperm.xlu0 %205, %v171
    %v207 = vpop.permute.xlu0 %206
    %v208 = vlaneseq
    %v209 = vshrl.u32 %v208, 7
    %v210 = vadd.s32 %v209, 48
    %211 = vset.pattern.permute.xlu0 %v210
    %212 = vperm.xlu0 %211, %v171
    %v213 = vpop.permute.xlu0 %212
    %v214 = vlaneseq
    %v215 = vshrl.u32 %v214, 7
    %v216 = vadd.s32 %v215, 56
    %217 = vset.pattern.permute.xlu0 %v216
    %218 = vperm.xlu0 %217, %v171
    %v219 = vpop.permute.xlu0 %218
    %v220 = vlaneseq
    %v221 = vshrl.u32 %v220, 7
    %v222 = vadd.s32 %v221, 64
    %223 = vset.pattern.permute.xlu0 %v222
    %224 = vperm.xlu0 %223, %v171
    %v225 = vpop.permute.xlu0 %224
    %v226 = vlaneseq
    %v227 = vshrl.u32 %v226, 7
    %v228 = vadd.s32 %v227, 72
    %229 = vset.pattern.permute.xlu0 %v228
    %230 = vperm.xlu0 %229, %v171
    %v231 = vpop.permute.xlu0 %230
    %v232 = vlaneseq
    %v233 = vshrl.u32 %v232, 7
    %v234 = vadd.s32 %v233, 80
    %235 = vset.pattern.permute.xlu0 %v234
    %236 = vperm.xlu0 %235, %v171
    %v237 = vpop.permute.xlu0 %236
    %v238 = vlaneseq
    %v239 = vshrl.u32 %v238, 7
    %v240 = vadd.s32 %v239, 88
    %241 = vset.pattern.permute.xlu0 %v240
    %242 = vperm.xlu0 %241, %v171
    %v243 = vpop.permute.xlu0 %242
    %v244 = vlaneseq
    %v245 = vshrl.u32 %v244, 7
    %v246 = vadd.s32 %v245, 96
    %247 = vset.pattern.permute.xlu0 %v246
    %248 = vperm.xlu0 %247, %v171
    %v249 = vpop.permute.xlu0 %248
    %v250 = vlaneseq
    %v251 = vshrl.u32 %v250, 7
    %v252 = vadd.s32 %v251, 104
    %253 = vset.pattern.permute.xlu0 %v252
    %254 = vperm.xlu0 %253, %v171
    %v255 = vpop.permute.xlu0 %254
    %v256 = vlaneseq
    %v257 = vshrl.u32 %v256, 7
    %v258 = vadd.s32 %v257, 112
    %259 = vset.pattern.permute.xlu0 %v258
    %260 = vperm.xlu0 %259, %v171
    %v261 = vpop.permute.xlu0 %260
    %v262 = vlaneseq
    %v263 = vshrl.u32 %v262, 7
    %v264 = vadd.s32 %v263, 120
    %265 = vset.pattern.permute.xlu0 %v264
    %266 = vperm.xlu0 %265, %v171
    %v267 = vpop.permute.xlu0 %266
    %v268 = vperm.slane %v71, 2
    %v269 = vlaneseq
    %v270 = vshrl.u32 %v269, 7
    %272 = vset.pattern.permute.xlu0 %v270
    %273 = vperm.xlu0 %272, %v268
    %v274 = vpop.permute.xlu0 %273
    %v275 = vlaneseq
    %v276 = vshrl.u32 %v275, 7
    %v277 = vadd.s32 %v276, 8
    %278 = vset.pattern.permute.xlu0 %v277
    %279 = vperm.xlu0 %278, %v268
    %v280 = vpop.permute.xlu0 %279
    %v281 = vlaneseq
    %v282 = vshrl.u32 %v281, 7
    %v283 = vadd.s32 %v282, 16
    %284 = vset.pattern.permute.xlu0 %v283
    %285 = vperm.xlu0 %284, %v268
    %v286 = vpop.permute.xlu0 %285
    %v287 = vlaneseq
    %v288 = vshrl.u32 %v287, 7
    %v289 = vadd.s32 %v288, 24
    %290 = vset.pattern.permute.xlu0 %v289
    %291 = vperm.xlu0 %290, %v268
    %v292 = vpop.permute.xlu0 %291
    %v293 = vlaneseq
    %v294 = vshrl.u32 %v293, 7
    %v295 = vadd.s32 %v294, 32
    %296 = vset.pattern.permute.xlu0 %v295
    %297 = vperm.xlu0 %296, %v268
    %v298 = vpop.permute.xlu0 %297
    %v299 = vlaneseq
    %v300 = vshrl.u32 %v299, 7
    %v301 = vadd.s32 %v300, 40
    %302 = vset.pattern.permute.xlu0 %v301
    %303 = vperm.xlu0 %302, %v268
    %v304 = vpop.permute.xlu0 %303
    %v305 = vlaneseq
    %v306 = vshrl.u32 %v305, 7
    %v307 = vadd.s32 %v306, 48
    %308 = vset.pattern.permute.xlu0 %v307
    %309 = vperm.xlu0 %308, %v268
    %v310 = vpop.permute.xlu0 %309
    %v311 = vlaneseq
    %v312 = vshrl.u32 %v311, 7
    %v313 = vadd.s32 %v312, 56
    %314 = vset.pattern.permute.xlu0 %v313
    %315 = vperm.xlu0 %314, %v268
    %v316 = vpop.permute.xlu0 %315
    %v317 = vlaneseq
    %v318 = vshrl.u32 %v317, 7
    %v319 = vadd.s32 %v318, 64
    %320 = vset.pattern.permute.xlu0 %v319
    %321 = vperm.xlu0 %320, %v268
    %v322 = vpop.permute.xlu0 %321
    %v323 = vlaneseq
    %v324 = vshrl.u32 %v323, 7
    %v325 = vadd.s32 %v324, 72
    %326 = vset.pattern.permute.xlu0 %v325
    %327 = vperm.xlu0 %326, %v268
    %v328 = vpop.permute.xlu0 %327
    %v329 = vlaneseq
    %v330 = vshrl.u32 %v329, 7
    %v331 = vadd.s32 %v330, 80
    %332 = vset.pattern.permute.xlu0 %v331
    %333 = vperm.xlu0 %332, %v268
    %v334 = vpop.permute.xlu0 %333
    %v335 = vlaneseq
    %v336 = vshrl.u32 %v335, 7
    %v337 = vadd.s32 %v336, 88
    %338 = vset.pattern.permute.xlu0 %v337
    %339 = vperm.xlu0 %338, %v268
    %v340 = vpop.permute.xlu0 %339
    %v341 = vlaneseq
    %v342 = vshrl.u32 %v341, 7
    %v343 = vadd.s32 %v342, 96
    %344 = vset.pattern.permute.xlu0 %v343
    %345 = vperm.xlu0 %344, %v268
    %v346 = vpop.permute.xlu0 %345
    %v347 = vlaneseq
    %v348 = vshrl.u32 %v347, 7
    %v349 = vadd.s32 %v348, 104
    %350 = vset.pattern.permute.xlu0 %v349
    %351 = vperm.xlu0 %350, %v268
    %v352 = vpop.permute.xlu0 %351
    %v353 = vlaneseq
    %v354 = vshrl.u32 %v353, 7
    %v355 = vadd.s32 %v354, 112
    %356 = vset.pattern.permute.xlu0 %v355
    %357 = vperm.xlu0 %356, %v268
    %v358 = vpop.permute.xlu0 %357
    %v359 = vlaneseq
    %v360 = vshrl.u32 %v359, 7
    %v361 = vadd.s32 %v360, 120
    %362 = vset.pattern.permute.xlu0 %v361
    %363 = vperm.xlu0 %362, %v268
    %v364 = vpop.permute.xlu0 %363
    %v365 = vperm.slane %v71, 3
    %v366 = vlaneseq
    %v367 = vshrl.u32 %v366, 7
    %369 = vset.pattern.permute.xlu0 %v367
    %370 = vperm.xlu0 %369, %v365
    %v371 = vpop.permute.xlu0 %370
    %v372 = vlaneseq
    %v373 = vshrl.u32 %v372, 7
    %v374 = vadd.s32 %v373, 8
    %375 = vset.pattern.permute.xlu0 %v374
    %376 = vperm.xlu0 %375, %v365
    %v377 = vpop.permute.xlu0 %376
    %v378 = vlaneseq
    %v379 = vshrl.u32 %v378, 7
    %v380 = vadd.s32 %v379, 16
    %381 = vset.pattern.permute.xlu0 %v380
    %382 = vperm.xlu0 %381, %v365
    %v383 = vpop.permute.xlu0 %382
    %v384 = vlaneseq
    %v385 = vshrl.u32 %v384, 7
    %v386 = vadd.s32 %v385, 24
    %387 = vset.pattern.permute.xlu0 %v386
    %388 = vperm.xlu0 %387, %v365
    %v389 = vpop.permute.xlu0 %388
    %v390 = vlaneseq
    %v391 = vshrl.u32 %v390, 7
    %v392 = vadd.s32 %v391, 32
    %393 = vset.pattern.permute.xlu0 %v392
    %394 = vperm.xlu0 %393, %v365
    %v395 = vpop.permute.xlu0 %394
    %v396 = vlaneseq
    %v397 = vshrl.u32 %v396, 7
    %v398 = vadd.s32 %v397, 40
    %399 = vset.pattern.permute.xlu0 %v398
    %400 = vperm.xlu0 %399, %v365
    %v401 = vpop.permute.xlu0 %400
    %v402 = vlaneseq
    %v403 = vshrl.u32 %v402, 7
    %v404 = vadd.s32 %v403, 48
    %405 = vset.pattern.permute.xlu0 %v404
    %406 = vperm.xlu0 %405, %v365
    %v407 = vpop.permute.xlu0 %406
    %v408 = vlaneseq
    %v409 = vshrl.u32 %v408, 7
    %v410 = vadd.s32 %v409, 56
    %411 = vset.pattern.permute.xlu0 %v410
    %412 = vperm.xlu0 %411, %v365
    %v413 = vpop.permute.xlu0 %412
    %v414 = vlaneseq
    %v415 = vshrl.u32 %v414, 7
    %v416 = vadd.s32 %v415, 64
    %417 = vset.pattern.permute.xlu0 %v416
    %418 = vperm.xlu0 %417, %v365
    %v419 = vpop.permute.xlu0 %418
    %v420 = vlaneseq
    %v421 = vshrl.u32 %v420, 7
    %v422 = vadd.s32 %v421, 72
    %423 = vset.pattern.permute.xlu0 %v422
    %424 = vperm.xlu0 %423, %v365
    %v425 = vpop.permute.xlu0 %424
    %v426 = vlaneseq
    %v427 = vshrl.u32 %v426, 7
    %v428 = vadd.s32 %v427, 80
    %429 = vset.pattern.permute.xlu0 %v428
    %430 = vperm.xlu0 %429, %v365
    %v431 = vpop.permute.xlu0 %430
    %v432 = vlaneseq
    %v433 = vshrl.u32 %v432, 7
    %v434 = vadd.s32 %v433, 88
    %435 = vset.pattern.permute.xlu0 %v434
    %436 = vperm.xlu0 %435, %v365
    %v437 = vpop.permute.xlu0 %436
    %v438 = vlaneseq
    %v439 = vshrl.u32 %v438, 7
    %v440 = vadd.s32 %v439, 96
    %441 = vset.pattern.permute.xlu0 %v440
    %442 = vperm.xlu0 %441, %v365
    %v443 = vpop.permute.xlu0 %442
    %v444 = vlaneseq
    %v445 = vshrl.u32 %v444, 7
    %v446 = vadd.s32 %v445, 104
    %447 = vset.pattern.permute.xlu0 %v446
    %448 = vperm.xlu0 %447, %v365
    %v449 = vpop.permute.xlu0 %448
    %v450 = vlaneseq
    %v451 = vshrl.u32 %v450, 7
    %v452 = vadd.s32 %v451, 112
    %453 = vset.pattern.permute.xlu0 %v452
    %454 = vperm.xlu0 %453, %v365
    %v455 = vpop.permute.xlu0 %454
    %v456 = vlaneseq
    %v457 = vshrl.u32 %v456, 7
    %v458 = vadd.s32 %v457, 120
    %459 = vset.pattern.permute.xlu0 %v458
    %460 = vperm.xlu0 %459, %v365
    %v461 = vpop.permute.xlu0 %460
    %v462 = vperm.slane %v71, 4
    %v463 = vlaneseq
    %v464 = vshrl.u32 %v463, 7
    %466 = vset.pattern.permute.xlu0 %v464
    %467 = vperm.xlu0 %466, %v462
    %v468 = vpop.permute.xlu0 %467
    %v469 = vlaneseq
    %v470 = vshrl.u32 %v469, 7
    %v471 = vadd.s32 %v470, 8
    %472 = vset.pattern.permute.xlu0 %v471
    %473 = vperm.xlu0 %472, %v462
    %v474 = vpop.permute.xlu0 %473
    %v475 = vlaneseq
    %v476 = vshrl.u32 %v475, 7
    %v477 = vadd.s32 %v476, 16
    %478 = vset.pattern.permute.xlu0 %v477
    %479 = vperm.xlu0 %478, %v462
    %v480 = vpop.permute.xlu0 %479
    %v481 = vlaneseq
    %v482 = vshrl.u32 %v481, 7
    %v483 = vadd.s32 %v482, 24
    %484 = vset.pattern.permute.xlu0 %v483
    %485 = vperm.xlu0 %484, %v462
    %v486 = vpop.permute.xlu0 %485
    %v487 = vlaneseq
    %v488 = vshrl.u32 %v487, 7
    %v489 = vadd.s32 %v488, 32
    %490 = vset.pattern.permute.xlu0 %v489
    %491 = vperm.xlu0 %490, %v462
    %v492 = vpop.permute.xlu0 %491
    %v493 = vlaneseq
    %v494 = vshrl.u32 %v493, 7
    %v495 = vadd.s32 %v494, 40
    %496 = vset.pattern.permute.xlu0 %v495
    %497 = vperm.xlu0 %496, %v462
    %v498 = vpop.permute.xlu0 %497
    %v499 = vlaneseq
    %v500 = vshrl.u32 %v499, 7
    %v501 = vadd.s32 %v500, 48
    %502 = vset.pattern.permute.xlu0 %v501
    %503 = vperm.xlu0 %502, %v462
    %v504 = vpop.permute.xlu0 %503
    %v505 = vlaneseq
    %v506 = vshrl.u32 %v505, 7
    %v507 = vadd.s32 %v506, 56
    %508 = vset.pattern.permute.xlu0 %v507
    %509 = vperm.xlu0 %508, %v462
    %v510 = vpop.permute.xlu0 %509
    %v511 = vlaneseq
    %v512 = vshrl.u32 %v511, 7
    %v513 = vadd.s32 %v512, 64
    %514 = vset.pattern.permute.xlu0 %v513
    %515 = vperm.xlu0 %514, %v462
    %v516 = vpop.permute.xlu0 %515
    %v517 = vlaneseq
    %v518 = vshrl.u32 %v517, 7
    %v519 = vadd.s32 %v518, 72
    %520 = vset.pattern.permute.xlu0 %v519
    %521 = vperm.xlu0 %520, %v462
    %v522 = vpop.permute.xlu0 %521
    %v523 = vlaneseq
    %v524 = vshrl.u32 %v523, 7
    %v525 = vadd.s32 %v524, 80
    %526 = vset.pattern.permute.xlu0 %v525
    %527 = vperm.xlu0 %526, %v462
    %v528 = vpop.permute.xlu0 %527
    %v529 = vlaneseq
    %v530 = vshrl.u32 %v529, 7
    %v531 = vadd.s32 %v530, 88
    %532 = vset.pattern.permute.xlu0 %v531
    %533 = vperm.xlu0 %532, %v462
    %v534 = vpop.permute.xlu0 %533
    %v535 = vlaneseq
    %v536 = vshrl.u32 %v535, 7
    %v537 = vadd.s32 %v536, 96
    %538 = vset.pattern.permute.xlu0 %v537
    %539 = vperm.xlu0 %538, %v462
    %v540 = vpop.permute.xlu0 %539
    %v541 = vlaneseq
    %v542 = vshrl.u32 %v541, 7
    %v543 = vadd.s32 %v542, 104
    %544 = vset.pattern.permute.xlu0 %v543
    %545 = vperm.xlu0 %544, %v462
    %v546 = vpop.permute.xlu0 %545
    %v547 = vlaneseq
    %v548 = vshrl.u32 %v547, 7
    %v549 = vadd.s32 %v548, 112
    %550 = vset.pattern.permute.xlu0 %v549
    %551 = vperm.xlu0 %550, %v462
    %v552 = vpop.permute.xlu0 %551
    %v553 = vlaneseq
    %v554 = vshrl.u32 %v553, 7
    %v555 = vadd.s32 %v554, 120
    %556 = vset.pattern.permute.xlu0 %v555
    %557 = vperm.xlu0 %556, %v462
    %v558 = vpop.permute.xlu0 %557
    %v559 = vperm.slane %v71, 5
    %v560 = vlaneseq
    %v561 = vshrl.u32 %v560, 7
    %563 = vset.pattern.permute.xlu0 %v561
    %564 = vperm.xlu0 %563, %v559
    %v565 = vpop.permute.xlu0 %564
    %v566 = vlaneseq
    %v567 = vshrl.u32 %v566, 7
    %v568 = vadd.s32 %v567, 8
    %569 = vset.pattern.permute.xlu0 %v568
    %570 = vperm.xlu0 %569, %v559
    %v571 = vpop.permute.xlu0 %570
    %v572 = vlaneseq
    %v573 = vshrl.u32 %v572, 7
    %v574 = vadd.s32 %v573, 16
    %575 = vset.pattern.permute.xlu0 %v574
    %576 = vperm.xlu0 %575, %v559
    %v577 = vpop.permute.xlu0 %576
    %v578 = vlaneseq
    %v579 = vshrl.u32 %v578, 7
    %v580 = vadd.s32 %v579, 24
    %581 = vset.pattern.permute.xlu0 %v580
    %582 = vperm.xlu0 %581, %v559
    %v583 = vpop.permute.xlu0 %582
    %v584 = vlaneseq
    %v585 = vshrl.u32 %v584, 7
    %v586 = vadd.s32 %v585, 32
    %587 = vset.pattern.permute.xlu0 %v586
    %588 = vperm.xlu0 %587, %v559
    %v589 = vpop.permute.xlu0 %588
    %v590 = vlaneseq
    %v591 = vshrl.u32 %v590, 7
    %v592 = vadd.s32 %v591, 40
    %593 = vset.pattern.permute.xlu0 %v592
    %594 = vperm.xlu0 %593, %v559
    %v595 = vpop.permute.xlu0 %594
    %v596 = vlaneseq
    %v597 = vshrl.u32 %v596, 7
    %v598 = vadd.s32 %v597, 48
    %599 = vset.pattern.permute.xlu0 %v598
    %600 = vperm.xlu0 %599, %v559
    %v601 = vpop.permute.xlu0 %600
    %v602 = vlaneseq
    %v603 = vshrl.u32 %v602, 7
    %v604 = vadd.s32 %v603, 56
    %605 = vset.pattern.permute.xlu0 %v604
    %606 = vperm.xlu0 %605, %v559
    %v607 = vpop.permute.xlu0 %606
    %v608 = vlaneseq
    %v609 = vshrl.u32 %v608, 7
    %v610 = vadd.s32 %v609, 64
    %611 = vset.pattern.permute.xlu0 %v610
    %612 = vperm.xlu0 %611, %v559
    %v613 = vpop.permute.xlu0 %612
    %v614 = vlaneseq
    %v615 = vshrl.u32 %v614, 7
    %v616 = vadd.s32 %v615, 72
    %617 = vset.pattern.permute.xlu0 %v616
    %618 = vperm.xlu0 %617, %v559
    %v619 = vpop.permute.xlu0 %618
    %v620 = vlaneseq
    %v621 = vshrl.u32 %v620, 7
    %v622 = vadd.s32 %v621, 80
    %623 = vset.pattern.permute.xlu0 %v622
    %624 = vperm.xlu0 %623, %v559
    %v625 = vpop.permute.xlu0 %624
    %v626 = vlaneseq
    %v627 = vshrl.u32 %v626, 7
    %v628 = vadd.s32 %v627, 88
    %629 = vset.pattern.permute.xlu0 %v628
    %630 = vperm.xlu0 %629, %v559
    %v631 = vpop.permute.xlu0 %630
    %v632 = vlaneseq
    %v633 = vshrl.u32 %v632, 7
    %v634 = vadd.s32 %v633, 96
    %635 = vset.pattern.permute.xlu0 %v634
    %636 = vperm.xlu0 %635, %v559
    %v637 = vpop.permute.xlu0 %636
    %v638 = vlaneseq
    %v639 = vshrl.u32 %v638, 7
    %v640 = vadd.s32 %v639, 104
    %641 = vset.pattern.permute.xlu0 %v640
    %642 = vperm.xlu0 %641, %v559
    %v643 = vpop.permute.xlu0 %642
    %v644 = vlaneseq
    %v645 = vshrl.u32 %v644, 7
    %v646 = vadd.s32 %v645, 112
    %647 = vset.pattern.permute.xlu0 %v646
    %648 = vperm.xlu0 %647, %v559
    %v649 = vpop.permute.xlu0 %648
    %v650 = vlaneseq
    %v651 = vshrl.u32 %v650, 7
    %v652 = vadd.s32 %v651, 120
    %653 = vset.pattern.permute.xlu0 %v652
    %654 = vperm.xlu0 %653, %v559
    %v655 = vpop.permute.xlu0 %654
    %v656 = vperm.slane %v71, 6
    %v657 = vlaneseq
    %v658 = vshrl.u32 %v657, 7
    %660 = vset.pattern.permute.xlu0 %v658
    %661 = vperm.xlu0 %660, %v656
    %v662 = vpop.permute.xlu0 %661
    %v663 = vlaneseq
    %v664 = vshrl.u32 %v663, 7
    %v665 = vadd.s32 %v664, 8
    %666 = vset.pattern.permute.xlu0 %v665
    %667 = vperm.xlu0 %666, %v656
    %v668 = vpop.permute.xlu0 %667
    %v669 = vlaneseq
    %v670 = vshrl.u32 %v669, 7
    %v671 = vadd.s32 %v670, 16
    %672 = vset.pattern.permute.xlu0 %v671
    %673 = vperm.xlu0 %672, %v656
    %v674 = vpop.permute.xlu0 %673
    %v675 = vlaneseq
    %v676 = vshrl.u32 %v675, 7
    %v677 = vadd.s32 %v676, 24
    %678 = vset.pattern.permute.xlu0 %v677
    %679 = vperm.xlu0 %678, %v656
    %v680 = vpop.permute.xlu0 %679
    %v681 = vlaneseq
    %v682 = vshrl.u32 %v681, 7
    %v683 = vadd.s32 %v682, 32
    %684 = vset.pattern.permute.xlu0 %v683
    %685 = vperm.xlu0 %684, %v656
    %v686 = vpop.permute.xlu0 %685
    %v687 = vlaneseq
    %v688 = vshrl.u32 %v687, 7
    %v689 = vadd.s32 %v688, 40
    %690 = vset.pattern.permute.xlu0 %v689
    %691 = vperm.xlu0 %690, %v656
    %v692 = vpop.permute.xlu0 %691
    %v693 = vlaneseq
    %v694 = vshrl.u32 %v693, 7
    %v695 = vadd.s32 %v694, 48
    %696 = vset.pattern.permute.xlu0 %v695
    %697 = vperm.xlu0 %696, %v656
    %v698 = vpop.permute.xlu0 %697
    %v699 = vlaneseq
    %v700 = vshrl.u32 %v699, 7
    %v701 = vadd.s32 %v700, 56
    %702 = vset.pattern.permute.xlu0 %v701
    %703 = vperm.xlu0 %702, %v656
    %v704 = vpop.permute.xlu0 %703
    %v705 = vlaneseq
    %v706 = vshrl.u32 %v705, 7
    %v707 = vadd.s32 %v706, 64
    %708 = vset.pattern.permute.xlu0 %v707
    %709 = vperm.xlu0 %708, %v656
    %v710 = vpop.permute.xlu0 %709
    %v711 = vlaneseq
    %v712 = vshrl.u32 %v711, 7
    %v713 = vadd.s32 %v712, 72
    %714 = vset.pattern.permute.xlu0 %v713
    %715 = vperm.xlu0 %714, %v656
    %v716 = vpop.permute.xlu0 %715
    %v717 = vlaneseq
    %v718 = vshrl.u32 %v717, 7
    %v719 = vadd.s32 %v718, 80
    %720 = vset.pattern.permute.xlu0 %v719
    %721 = vperm.xlu0 %720, %v656
    %v722 = vpop.permute.xlu0 %721
    %v723 = vlaneseq
    %v724 = vshrl.u32 %v723, 7
    %v725 = vadd.s32 %v724, 88
    %726 = vset.pattern.permute.xlu0 %v725
    %727 = vperm.xlu0 %726, %v656
    %v728 = vpop.permute.xlu0 %727
    %v729 = vlaneseq
    %v730 = vshrl.u32 %v729, 7
    %v731 = vadd.s32 %v730, 96
    %732 = vset.pattern.permute.xlu0 %v731
    %733 = vperm.xlu0 %732, %v656
    %v734 = vpop.permute.xlu0 %733
    %v735 = vlaneseq
    %v736 = vshrl.u32 %v735, 7
    %v737 = vadd.s32 %v736, 104
    %738 = vset.pattern.permute.xlu0 %v737
    %739 = vperm.xlu0 %738, %v656
    %v740 = vpop.permute.xlu0 %739
    %v741 = vlaneseq
    %v742 = vshrl.u32 %v741, 7
    %v743 = vadd.s32 %v742, 112
    %744 = vset.pattern.permute.xlu0 %v743
    %745 = vperm.xlu0 %744, %v656
    %v746 = vpop.permute.xlu0 %745
    %v747 = vlaneseq
    %v748 = vshrl.u32 %v747, 7
    %v749 = vadd.s32 %v748, 120
    %750 = vset.pattern.permute.xlu0 %v749
    %751 = vperm.xlu0 %750, %v656
    %v752 = vpop.permute.xlu0 %751
    %v753 = vperm.slane %v71, 7
    %v754 = vlaneseq
    %v755 = vshrl.u32 %v754, 7
    %757 = vset.pattern.permute.xlu0 %v755
    %758 = vperm.xlu0 %757, %v753
    %v759 = vpop.permute.xlu0 %758
    %v760 = vlaneseq
    %v761 = vshrl.u32 %v760, 7
    %v762 = vadd.s32 %v761, 8
    %763 = vset.pattern.permute.xlu0 %v762
    %764 = vperm.xlu0 %763, %v753
    %v765 = vpop.permute.xlu0 %764
    %v766 = vlaneseq
    %v767 = vshrl.u32 %v766, 7
    %v768 = vadd.s32 %v767, 16
    %769 = vset.pattern.permute.xlu0 %v768
    %770 = vperm.xlu0 %769, %v753
    %v771 = vpop.permute.xlu0 %770
    %v772 = vlaneseq
    %v773 = vshrl.u32 %v772, 7
    %v774 = vadd.s32 %v773, 24
    %775 = vset.pattern.permute.xlu0 %v774
    %776 = vperm.xlu0 %775, %v753
    %v777 = vpop.permute.xlu0 %776
    %v778 = vlaneseq
    %v779 = vshrl.u32 %v778, 7
    %v780 = vadd.s32 %v779, 32
    %781 = vset.pattern.permute.xlu0 %v780
    %782 = vperm.xlu0 %781, %v753
    %v783 = vpop.permute.xlu0 %782
    %v784 = vlaneseq
    %v785 = vshrl.u32 %v784, 7
    %v786 = vadd.s32 %v785, 40
    %787 = vset.pattern.permute.xlu0 %v786
    %788 = vperm.xlu0 %787, %v753
    %v789 = vpop.permute.xlu0 %788
    %v790 = vlaneseq
    %v791 = vshrl.u32 %v790, 7
    %v792 = vadd.s32 %v791, 48
    %793 = vset.pattern.permute.xlu0 %v792
    %794 = vperm.xlu0 %793, %v753
    %v795 = vpop.permute.xlu0 %794
    %v796 = vlaneseq
    %v797 = vshrl.u32 %v796, 7
    %v798 = vadd.s32 %v797, 56
    %799 = vset.pattern.permute.xlu0 %v798
    %800 = vperm.xlu0 %799, %v753
    %v801 = vpop.permute.xlu0 %800
    %v802 = vlaneseq
    %v803 = vshrl.u32 %v802, 7
    %v804 = vadd.s32 %v803, 64
    %805 = vset.pattern.permute.xlu0 %v804
    %806 = vperm.xlu0 %805, %v753
    %v807 = vpop.permute.xlu0 %806
    %v808 = vlaneseq
    %v809 = vshrl.u32 %v808, 7
    %v810 = vadd.s32 %v809, 72
    %811 = vset.pattern.permute.xlu0 %v810
    %812 = vperm.xlu0 %811, %v753
    %v813 = vpop.permute.xlu0 %812
    %v814 = vlaneseq
    %v815 = vshrl.u32 %v814, 7
    %v816 = vadd.s32 %v815, 80
    %817 = vset.pattern.permute.xlu0 %v816
    %818 = vperm.xlu0 %817, %v753
    %v819 = vpop.permute.xlu0 %818
    %v820 = vlaneseq
    %v821 = vshrl.u32 %v820, 7
    %v822 = vadd.s32 %v821, 88
    %823 = vset.pattern.permute.xlu0 %v822
    %824 = vperm.xlu0 %823, %v753
    %v825 = vpop.permute.xlu0 %824
    %v826 = vlaneseq
    %v827 = vshrl.u32 %v826, 7
    %v828 = vadd.s32 %v827, 96
    %829 = vset.pattern.permute.xlu0 %v828
    %830 = vperm.xlu0 %829, %v753
    %v831 = vpop.permute.xlu0 %830
    %v832 = vlaneseq
    %v833 = vshrl.u32 %v832, 7
    %v834 = vadd.s32 %v833, 104
    %835 = vset.pattern.permute.xlu0 %v834
    %836 = vperm.xlu0 %835, %v753
    %v837 = vpop.permute.xlu0 %836
    %v838 = vlaneseq
    %v839 = vshrl.u32 %v838, 7
    %v840 = vadd.s32 %v839, 112
    %841 = vset.pattern.permute.xlu0 %v840
    %842 = vperm.xlu0 %841, %v753
    %v843 = vpop.permute.xlu0 %842
    %v844 = vlaneseq
    %v845 = vshrl.u32 %v844, 7
    %v846 = vadd.s32 %v845, 120
    %847 = vset.pattern.permute.xlu0 %v846
    %848 = vperm.xlu0 %847, %v753
    %v849 = vpop.permute.xlu0 %848
    %vm850 = vcmp.eq.s32.totalorder %v80, %v73
    %vm851 = vcmp.eq.s32.totalorder %v86, %v73
    %vm852 = vcmp.eq.s32.totalorder %v92, %v73
    %vm853 = vcmp.eq.s32.totalorder %v98, %v73
    %vm854 = vcmp.eq.s32.totalorder %v104, %v73
    %vm855 = vcmp.eq.s32.totalorder %v110, %v73
    %vm856 = vcmp.eq.s32.totalorder %v116, %v73
    %vm857 = vcmp.eq.s32.totalorder %v122, %v73
    %vm858 = vcmp.eq.s32.totalorder %v128, %v73
    %vm859 = vcmp.eq.s32.totalorder %v134, %v73
    %vm860 = vcmp.eq.s32.totalorder %v140, %v73
    %vm861 = vcmp.eq.s32.totalorder %v146, %v73
    %vm862 = vcmp.eq.s32.totalorder %v152, %v73
    %vm863 = vcmp.eq.s32.totalorder %v158, %v73
    %vm864 = vcmp.eq.s32.totalorder %v164, %v73
    %vm865 = vcmp.eq.s32.totalorder %v170, %v73
    %vm866 = vcmp.eq.s32.totalorder %v177, %v73
    %vm867 = vcmp.eq.s32.totalorder %v183, %v73
    %vm868 = vcmp.eq.s32.totalorder %v189, %v73
    %vm869 = vcmp.eq.s32.totalorder %v195, %v73
    %vm870 = vcmp.eq.s32.totalorder %v201, %v73
    %vm871 = vcmp.eq.s32.totalorder %v207, %v73
    %vm872 = vcmp.eq.s32.totalorder %v213, %v73
    %vm873 = vcmp.eq.s32.totalorder %v219, %v73
    %vm874 = vcmp.eq.s32.totalorder %v225, %v73
    %vm875 = vcmp.eq.s32.totalorder %v231, %v73
    %vm876 = vcmp.eq.s32.totalorder %v237, %v73
    %vm877 = vcmp.eq.s32.totalorder %v243, %v73
    %vm878 = vcmp.eq.s32.totalorder %v249, %v73
    %vm879 = vcmp.eq.s32.totalorder %v255, %v73
    %vm880 = vcmp.eq.s32.totalorder %v261, %v73
    %vm881 = vcmp.eq.s32.totalorder %v267, %v73
    %vm882 = vcmp.eq.s32.totalorder %v274, %v73
    %vm883 = vcmp.eq.s32.totalorder %v280, %v73
    %vm884 = vcmp.eq.s32.totalorder %v286, %v73
    %vm885 = vcmp.eq.s32.totalorder %v292, %v73
    %vm886 = vcmp.eq.s32.totalorder %v298, %v73
    %vm887 = vcmp.eq.s32.totalorder %v304, %v73
    %vm888 = vcmp.eq.s32.totalorder %v310, %v73
    %vm889 = vcmp.eq.s32.totalorder %v316, %v73
    %vm890 = vcmp.eq.s32.totalorder %v322, %v73
    %vm891 = vcmp.eq.s32.totalorder %v328, %v73
    %vm892 = vcmp.eq.s32.totalorder %v334, %v73
    %vm893 = vcmp.eq.s32.totalorder %v340, %v73
    %vm894 = vcmp.eq.s32.totalorder %v346, %v73
    %vm895 = vcmp.eq.s32.totalorder %v352, %v73
    %vm896 = vcmp.eq.s32.totalorder %v358, %v73
    %vm897 = vcmp.eq.s32.totalorder %v364, %v73
    %vm898 = vcmp.eq.s32.totalorder %v371, %v73
    %vm899 = vcmp.eq.s32.totalorder %v377, %v73
    %vm900 = vcmp.eq.s32.totalorder %v383, %v73
    %vm901 = vcmp.eq.s32.totalorder %v389, %v73
    %vm902 = vcmp.eq.s32.totalorder %v395, %v73
    %vm903 = vcmp.eq.s32.totalorder %v401, %v73
    %vm904 = vcmp.eq.s32.totalorder %v407, %v73
    %vm905 = vcmp.eq.s32.totalorder %v413, %v73
    %vm906 = vcmp.eq.s32.totalorder %v419, %v73
    %vm907 = vcmp.eq.s32.totalorder %v425, %v73
    %vm908 = vcmp.eq.s32.totalorder %v431, %v73
    %vm909 = vcmp.eq.s32.totalorder %v437, %v73
    %vm910 = vcmp.eq.s32.totalorder %v443, %v73
    %vm911 = vcmp.eq.s32.totalorder %v449, %v73
    %vm912 = vcmp.eq.s32.totalorder %v455, %v73
    %vm913 = vcmp.eq.s32.totalorder %v461, %v73
    %vm914 = vcmp.eq.s32.totalorder %v468, %v73
    %vm915 = vcmp.eq.s32.totalorder %v474, %v73
    %vm916 = vcmp.eq.s32.totalorder %v480, %v73
    %vm917 = vcmp.eq.s32.totalorder %v486, %v73
    %vm918 = vcmp.eq.s32.totalorder %v492, %v73
    %vm919 = vcmp.eq.s32.totalorder %v498, %v73
    %vm920 = vcmp.eq.s32.totalorder %v504, %v73
    %vm921 = vcmp.eq.s32.totalorder %v510, %v73
    %vm922 = vcmp.eq.s32.totalorder %v516, %v73
    %vm923 = vcmp.eq.s32.totalorder %v522, %v73
    %vm924 = vcmp.eq.s32.totalorder %v528, %v73
    %vm925 = vcmp.eq.s32.totalorder %v534, %v73
    %vm926 = vcmp.eq.s32.totalorder %v540, %v73
    %vm927 = vcmp.eq.s32.totalorder %v546, %v73
    %vm928 = vcmp.eq.s32.totalorder %v552, %v73
    %vm929 = vcmp.eq.s32.totalorder %v558, %v73
    %vm930 = vcmp.eq.s32.totalorder %v565, %v73
    %vm931 = vcmp.eq.s32.totalorder %v571, %v73
    %vm932 = vcmp.eq.s32.totalorder %v577, %v73
    %vm933 = vcmp.eq.s32.totalorder %v583, %v73
    %vm934 = vcmp.eq.s32.totalorder %v589, %v73
    %vm935 = vcmp.eq.s32.totalorder %v595, %v73
    %vm936 = vcmp.eq.s32.totalorder %v601, %v73
    %vm937 = vcmp.eq.s32.totalorder %v607, %v73
    %vm938 = vcmp.eq.s32.totalorder %v613, %v73
    %vm939 = vcmp.eq.s32.totalorder %v619, %v73
    %vm940 = vcmp.eq.s32.totalorder %v625, %v73
    %vm941 = vcmp.eq.s32.totalorder %v631, %v73
    %vm942 = vcmp.eq.s32.totalorder %v637, %v73
    %vm943 = vcmp.eq.s32.totalorder %v643, %v73
    %vm944 = vcmp.eq.s32.totalorder %v649, %v73
    %vm945 = vcmp.eq.s32.totalorder %v655, %v73
    %vm946 = vcmp.eq.s32.totalorder %v662, %v73
    %vm947 = vcmp.eq.s32.totalorder %v668, %v73
    %vm948 = vcmp.eq.s32.totalorder %v674, %v73
    %vm949 = vcmp.eq.s32.totalorder %v680, %v73
    %vm950 = vcmp.eq.s32.totalorder %v686, %v73
    %vm951 = vcmp.eq.s32.totalorder %v692, %v73
    %vm952 = vcmp.eq.s32.totalorder %v698, %v73
    %vm953 = vcmp.eq.s32.totalorder %v704, %v73
    %vm954 = vcmp.eq.s32.totalorder %v710, %v73
    %vm955 = vcmp.eq.s32.totalorder %v716, %v73
    %vm956 = vcmp.eq.s32.totalorder %v722, %v73
    %vm957 = vcmp.eq.s32.totalorder %v728, %v73
    %vm958 = vcmp.eq.s32.totalorder %v734, %v73
    %vm959 = vcmp.eq.s32.totalorder %v740, %v73
    %vm960 = vcmp.eq.s32.totalorder %v746, %v73
    %vm961 = vcmp.eq.s32.totalorder %v752, %v73
    %vm962 = vcmp.eq.s32.totalorder %v759, %v73
    %vm963 = vcmp.eq.s32.totalorder %v765, %v73
    %vm964 = vcmp.eq.s32.totalorder %v771, %v73
    %vm965 = vcmp.eq.s32.totalorder %v777, %v73
    %vm966 = vcmp.eq.s32.totalorder %v783, %v73
    %vm967 = vcmp.eq.s32.totalorder %v789, %v73
    %vm968 = vcmp.eq.s32.totalorder %v795, %v73
    %vm969 = vcmp.eq.s32.totalorder %v801, %v73
    %vm970 = vcmp.eq.s32.totalorder %v807, %v73
    %vm971 = vcmp.eq.s32.totalorder %v813, %v73
    %vm972 = vcmp.eq.s32.totalorder %v819, %v73
    %vm973 = vcmp.eq.s32.totalorder %v825, %v73
    %vm974 = vcmp.eq.s32.totalorder %v831, %v73
    %vm975 = vcmp.eq.s32.totalorder %v837, %v73
    %vm976 = vcmp.eq.s32.totalorder %v843, %v73
    %vm977 = vcmp.eq.s32.totalorder %v849, %v73
    %v978 = vld [vmem:[#allocation2] sm:$0xff]
    %v979 = vsel %vm850, 1, 0
    %v980 = vsel %vm851, 1, 0
    %v981 = vsel %vm852, 1, 0
    %v982 = vsel %vm853, 1, 0
    %v983 = vsel %vm854, 1, 0
    %v984 = vsel %vm855, 1, 0
    %v985 = vsel %vm856, 1, 0
    %v986 = vsel %vm857, 1, 0
    %v987 = vsel %vm858, 1, 0
    %v988 = vsel %vm859, 1, 0
    %v989 = vsel %vm860, 1, 0
    %v990 = vsel %vm861, 1, 0
    %v991 = vsel %vm862, 1, 0
    %v992 = vsel %vm863, 1, 0
    %v993 = vsel %vm864, 1, 0
    %v994 = vsel %vm865, 1, 0
    %v995 = vsel %vm866, 1, 0
    %v996 = vsel %vm867, 1, 0
    %v997 = vsel %vm868, 1, 0
    %v998 = vsel %vm869, 1, 0
    %v999 = vsel %vm870, 1, 0
    %v1000 = vsel %vm871, 1, 0
    %v1001 = vsel %vm872, 1, 0
    %v1002 = vsel %vm873, 1, 0
    %v1003 = vsel %vm874, 1, 0
    %v1004 = vsel %vm875, 1, 0
    %v1005 = vsel %vm876, 1, 0
    %v1006 = vsel %vm877, 1, 0
    %v1007 = vsel %vm878, 1, 0
    %v1008 = vsel %vm879, 1, 0
    %v1009 = vsel %vm880, 1, 0
    %v1010 = vsel %vm881, 1, 0
    %v1011 = vsel %vm882, 1, 0
    %v1012 = vsel %vm883, 1, 0
    %v1013 = vsel %vm884, 1, 0
    %v1014 = vsel %vm885, 1, 0
    %v1015 = vsel %vm886, 1, 0
    %v1016 = vsel %vm887, 1, 0
    %v1017 = vsel %vm888, 1, 0
    %v1018 = vsel %vm889, 1, 0
    %v1019 = vsel %vm890, 1, 0
    %v1020 = vsel %vm891, 1, 0
    %v1021 = vsel %vm892, 1, 0
    %v1022 = vsel %vm893, 1, 0
    %v1023 = vsel %vm894, 1, 0
    %v1024 = vsel %vm895, 1, 0
    %v1025 = vsel %vm896, 1, 0
    %v1026 = vsel %vm897, 1, 0
    %v1027 = vsel %vm898, 1, 0
    %v1028 = vsel %vm899, 1, 0
    %v1029 = vsel %vm900, 1, 0
    %v1030 = vsel %vm901, 1, 0
    %v1031 = vsel %vm902, 1, 0
    %v1032 = vsel %vm903, 1, 0
    %v1033 = vsel %vm904, 1, 0
    %v1034 = vsel %vm905, 1, 0
    %v1035 = vsel %vm906, 1, 0
    %v1036 = vsel %vm907, 1, 0
    %v1037 = vsel %vm908, 1, 0
    %v1038 = vsel %vm909, 1, 0
    %v1039 = vsel %vm910, 1, 0
    %v1040 = vsel %vm911, 1, 0
    %v1041 = vsel %vm912, 1, 0
    %v1042 = vsel %vm913, 1, 0
    %v1043 = vsel %vm914, 1, 0
    %v1044 = vsel %vm915, 1, 0
    %v1045 = vsel %vm916, 1, 0
    %v1046 = vsel %vm917, 1, 0
    %v1047 = vsel %vm918, 1, 0
    %v1048 = vsel %vm919, 1, 0
    %v1049 = vsel %vm920, 1, 0
    %v1050 = vsel %vm921, 1, 0
    %v1051 = vsel %vm922, 1, 0
    %v1052 = vsel %vm923, 1, 0
    %v1053 = vsel %vm924, 1, 0
    %v1054 = vsel %vm925, 1, 0
    %v1055 = vsel %vm926, 1, 0
    %v1056 = vsel %vm927, 1, 0
    %v1057 = vsel %vm928, 1, 0
    %v1058 = vsel %vm929, 1, 0
    %v1059 = vsel %vm930, 1, 0
    %v1060 = vsel %vm931, 1, 0
    %v1061 = vsel %vm932, 1, 0
    %v1062 = vsel %vm933, 1, 0
    %v1063 = vsel %vm934, 1, 0
    %v1064 = vsel %vm935, 1, 0
    %v1065 = vsel %vm936, 1, 0
    %v1066 = vsel %vm937, 1, 0
    %v1067 = vsel %vm938, 1, 0
    %v1068 = vsel %vm939, 1, 0
    %v1069 = vsel %vm940, 1, 0
    %v1070 = vsel %vm941, 1, 0
    %v1071 = vsel %vm942, 1, 0
    %v1072 = vsel %vm943, 1, 0
    %v1073 = vsel %vm944, 1, 0
    %v1074 = vsel %vm945, 1, 0
    %v1075 = vsel %vm946, 1, 0
    %v1076 = vsel %vm947, 1, 0
    %v1077 = vsel %vm948, 1, 0
    %v1078 = vsel %vm949, 1, 0
    %v1079 = vsel %vm950, 1, 0
    %v1080 = vsel %vm951, 1, 0
    %v1081 = vsel %vm952, 1, 0
    %v1082 = vsel %vm953, 1, 0
    %v1083 = vsel %vm954, 1, 0
    %v1084 = vsel %vm955, 1, 0
    %v1085 = vsel %vm956, 1, 0
    %v1086 = vsel %vm957, 1, 0
    %v1087 = vsel %vm958, 1, 0
    %v1088 = vsel %vm959, 1, 0
    %v1089 = vsel %vm960, 1, 0
    %v1090 = vsel %vm961, 1, 0
    %v1091 = vsel %vm962, 1, 0
    %v1092 = vsel %vm963, 1, 0
    %v1093 = vsel %vm964, 1, 0
    %v1094 = vsel %vm965, 1, 0
    %v1095 = vsel %vm966, 1, 0
    %v1096 = vsel %vm967, 1, 0
    %v1097 = vsel %vm968, 1, 0
    %v1098 = vsel %vm969, 1, 0
    %v1099 = vsel %vm970, 1, 0
    %v1100 = vsel %vm971, 1, 0
    %v1101 = vsel %vm972, 1, 0
    %v1102 = vsel %vm973, 1, 0
    %v1103 = vsel %vm974, 1, 0
    %v1104 = vsel %vm975, 1, 0
    %v1105 = vsel %vm976, 1, 0
    %v1106 = vsel %vm977, 1, 0
    %v1107 = vadd.s32 %v979, %v980
    %v1108 = vadd.s32 %v1107, %v981
    %v1109 = vadd.s32 %v1108, %v982
    %v1110 = vadd.s32 %v1109, %v983
    %v1111 = vadd.s32 %v1110, %v984
    %v1112 = vadd.s32 %v1111, %v985
    %v1113 = vadd.s32 %v1112, %v986
    %v1114 = vadd.s32 %v1113, %v987
    %v1115 = vadd.s32 %v1114, %v988
    %v1116 = vadd.s32 %v1115, %v989
    %v1117 = vadd.s32 %v1116, %v990
    %v1118 = vadd.s32 %v1117, %v991
    %v1119 = vadd.s32 %v1118, %v992
    %v1120 = vadd.s32 %v1119, %v993
    %v1121 = vadd.s32 %v1120, %v994
    %v1122 = vrot.slane %v1121, 4
    %v1123 = vadd.s32 %v1121, %v1122
    %v1124 = vrot.slane %v1123, 2
    %v1125 = vadd.s32 %v1123, %v1124
    %v1126 = vrot.slane %v1125, 1
    %v1127 = vadd.s32 %v1125, %v1126
    %v1128 = vadd.s32 %v995, %v996
    %v1129 = vadd.s32 %v1128, %v997
    %v1130 = vadd.s32 %v1129, %v998
    %v1131 = vadd.s32 %v1130, %v999
    %v1132 = vadd.s32 %v1131, %v1000
    %v1133 = vadd.s32 %v1132, %v1001
    %v1134 = vadd.s32 %v1133, %v1002
    %v1135 = vadd.s32 %v1134, %v1003
    %v1136 = vadd.s32 %v1135, %v1004
    %v1137 = vadd.s32 %v1136, %v1005
    %v1138 = vadd.s32 %v1137, %v1006
    %v1139 = vadd.s32 %v1138, %v1007
    %v1140 = vadd.s32 %v1139, %v1008
    %v1141 = vadd.s32 %v1140, %v1009
    %v1142 = vadd.s32 %v1141, %v1010
    %v1143 = vrot.slane %v1142, 4
    %v1144 = vadd.s32 %v1142, %v1143
    %v1145 = vrot.slane %v1144, 2
    %v1146 = vadd.s32 %v1144, %v1145
    %v1147 = vrot.slane %v1146, 1
    %v1148 = vadd.s32 %v1146, %v1147
    %v1149 = vadd.s32 %v1011, %v1012
    %v1150 = vadd.s32 %v1149, %v1013
    %v1151 = vadd.s32 %v1150, %v1014
    %v1152 = vadd.s32 %v1151, %v1015
    %v1153 = vadd.s32 %v1152, %v1016
    %v1154 = vadd.s32 %v1153, %v1017
    %v1155 = vadd.s32 %v1154, %v1018
    %v1156 = vadd.s32 %v1155, %v1019
    %v1157 = vadd.s32 %v1156, %v1020
    %v1158 = vadd.s32 %v1157, %v1021
    %v1159 = vadd.s32 %v1158, %v1022
    %v1160 = vadd.s32 %v1159, %v1023
    %v1161 = vadd.s32 %v1160, %v1024
    %v1162 = vadd.s32 %v1161, %v1025
    %v1163 = vadd.s32 %v1162, %v1026
    %v1164 = vrot.slane %v1163, 4
    %v1165 = vadd.s32 %v1163, %v1164
    %v1166 = vrot.slane %v1165, 2
    %v1167 = vadd.s32 %v1165, %v1166
    %v1168 = vrot.slane %v1167, 1
    %v1169 = vadd.s32 %v1167, %v1168
    %v1170 = vadd.s32 %v1027, %v1028
    %v1171 = vadd.s32 %v1170, %v1029
    %v1172 = vadd.s32 %v1171, %v1030
    %v1173 = vadd.s32 %v1172, %v1031
    %v1174 = vadd.s32 %v1173, %v1032
    %v1175 = vadd.s32 %v1174, %v1033
    %v1176 = vadd.s32 %v1175, %v1034
    %v1177 = vadd.s32 %v1176, %v1035
    %v1178 = vadd.s32 %v1177, %v1036
    %v1179 = vadd.s32 %v1178, %v1037
    %v1180 = vadd.s32 %v1179, %v1038
    %v1181 = vadd.s32 %v1180, %v1039
    %v1182 = vadd.s32 %v1181, %v1040
    %v1183 = vadd.s32 %v1182, %v1041
    %v1184 = vadd.s32 %v1183, %v1042
    %v1185 = vrot.slane %v1184, 4
    %v1186 = vadd.s32 %v1184, %v1185
    %v1187 = vrot.slane %v1186, 2
    %v1188 = vadd.s32 %v1186, %v1187
    %v1189 = vrot.slane %v1188, 1
    %v1190 = vadd.s32 %v1188, %v1189
    %v1191 = vadd.s32 %v1043, %v1044
    %v1192 = vadd.s32 %v1191, %v1045
    %v1193 = vadd.s32 %v1192, %v1046
    %v1194 = vadd.s32 %v1193, %v1047
    %v1195 = vadd.s32 %v1194, %v1048
    %v1196 = vadd.s32 %v1195, %v1049
    %v1197 = vadd.s32 %v1196, %v1050
    %v1198 = vadd.s32 %v1197, %v1051
    %v1199 = vadd.s32 %v1198, %v1052
    %v1200 = vadd.s32 %v1199, %v1053
    %v1201 = vadd.s32 %v1200, %v1054
    %v1202 = vadd.s32 %v1201, %v1055
    %v1203 = vadd.s32 %v1202, %v1056
    %v1204 = vadd.s32 %v1203, %v1057
    %v1205 = vadd.s32 %v1204, %v1058
    %v1206 = vrot.slane %v1205, 4
    %v1207 = vadd.s32 %v1205, %v1206
    %v1208 = vrot.slane %v1207, 2
    %v1209 = vadd.s32 %v1207, %v1208
    %v1210 = vrot.slane %v1209, 1
    %v1211 = vadd.s32 %v1209, %v1210
    %v1212 = vadd.s32 %v1059, %v1060
    %v1213 = vadd.s32 %v1212, %v1061
    %v1214 = vadd.s32 %v1213, %v1062
    %v1215 = vadd.s32 %v1214, %v1063
    %v1216 = vadd.s32 %v1215, %v1064
    %v1217 = vadd.s32 %v1216, %v1065
    %v1218 = vadd.s32 %v1217, %v1066
    %v1219 = vadd.s32 %v1218, %v1067
    %v1220 = vadd.s32 %v1219, %v1068
    %v1221 = vadd.s32 %v1220, %v1069
    %v1222 = vadd.s32 %v1221, %v1070
    %v1223 = vadd.s32 %v1222, %v1071
    %v1224 = vadd.s32 %v1223, %v1072
    %v1225 = vadd.s32 %v1224, %v1073
    %v1226 = vadd.s32 %v1225, %v1074
    %v1227 = vrot.slane %v1226, 4
    %v1228 = vadd.s32 %v1226, %v1227
    %v1229 = vrot.slane %v1228, 2
    %v1230 = vadd.s32 %v1228, %v1229
    %v1231 = vrot.slane %v1230, 1
    %v1232 = vadd.s32 %v1230, %v1231
    %v1233 = vadd.s32 %v1075, %v1076
    %v1234 = vadd.s32 %v1233, %v1077
    %v1235 = vadd.s32 %v1234, %v1078
    %v1236 = vadd.s32 %v1235, %v1079
    %v1237 = vadd.s32 %v1236, %v1080
    %v1238 = vadd.s32 %v1237, %v1081
    %v1239 = vadd.s32 %v1238, %v1082
    %v1240 = vadd.s32 %v1239, %v1083
    %v1241 = vadd.s32 %v1240, %v1084
    %v1242 = vadd.s32 %v1241, %v1085
    %v1243 = vadd.s32 %v1242, %v1086
    %v1244 = vadd.s32 %v1243, %v1087
    %v1245 = vadd.s32 %v1244, %v1088
    %v1246 = vadd.s32 %v1245, %v1089
    %v1247 = vadd.s32 %v1246, %v1090
    %v1248 = vrot.slane %v1247, 4
    %v1249 = vadd.s32 %v1247, %v1248
    %v1250 = vrot.slane %v1249, 2
    %v1251 = vadd.s32 %v1249, %v1250
    %v1252 = vrot.slane %v1251, 1
    %v1253 = vadd.s32 %v1251, %v1252
    %v1254 = vadd.s32 %v1091, %v1092
    %v1255 = vadd.s32 %v1254, %v1093
    %v1256 = vadd.s32 %v1255, %v1094
    %v1257 = vadd.s32 %v1256, %v1095
    %v1258 = vadd.s32 %v1257, %v1096
    %v1259 = vadd.s32 %v1258, %v1097
    %v1260 = vadd.s32 %v1259, %v1098
    %v1261 = vadd.s32 %v1260, %v1099
    %v1262 = vadd.s32 %v1261, %v1100
    %v1263 = vadd.s32 %v1262, %v1101
    %v1264 = vadd.s32 %v1263, %v1102
    %v1265 = vadd.s32 %v1264, %v1103
    %v1266 = vadd.s32 %v1265, %v1104
    %v1267 = vadd.s32 %v1266, %v1105
    %v1268 = vadd.s32 %v1267, %v1106
    %v1269 = vrot.slane %v1268, 4
    %v1270 = vadd.s32 %v1268, %v1269
    %v1271 = vrot.slane %v1270, 2
    %v1272 = vadd.s32 %v1270, %v1271
    %v1273 = vrot.slane %v1272, 1
    %v1274 = vadd.s32 %v1272, %v1273
    %vm1275 = vcmask 1041409
    %v1276 = vsel %vm1275, %v1148, %v1127
    %vm1277 = vcmask 1042434
    %v1278 = vsel %vm1277, %v1169, %v1276
    %vm1279 = vcmask 1043459
    %v1280 = vsel %vm1279, %v1190, %v1278
    %vm1281 = vcmask 1044484
    %v1282 = vsel %vm1281, %v1211, %v1280
    %vm1283 = vcmask 1045509
    %v1284 = vsel %vm1283, %v1232, %v1282
    %vm1285 = vcmask 1046534
    %v1286 = vsel %vm1285, %v1253, %v1284
    %vm1287 = vcmask 1047559
    %v1288 = vsel %vm1287, %v1274, %v1286
    %v1289 = vadd.s32 %v978, %v1288
    %1290 = vst [vmem:[#allocation2] sm:$0xff] %v1289
    // Predicated region
    $region38: #{tpu_custom_call.1} parent=1 // pred_check
      %p1291 = pneg %p66
    $region39: #{tpu_custom_call.1} parent=1 // pred_check_branch
      %1293 = sbr.rel (%p1291) target = $region41
    $region40: #{tpu_custom_call.1} parent=1 // pred_region
      %v1294 = vld [vmem:[#allocation2] sm:$0xff]
      %v1295 = vcvt.s32.f32 %v1294
      %v1296 = vmul.f32 %v1295, 0.125
      %v1297 = vld [vmem:[#allocation6] sm:$0xf]
      %v1298 = vld [vmem:[#allocation6 + $0x4] sm:$0xf]
      %v1299 = vld [vmem:[#allocation6 + $0x8] sm:$0xf]
      %v1300 = vld [vmem:[#allocation6 + $0xc] sm:$0xf]
      %v1301 = vld [vmem:[#allocation6 + $0x10] sm:$0xf]
      %v1302 = vld [vmem:[#allocation6 + $0x14] sm:$0xf]
      %v1303 = vld [vmem:[#allocation6 + $0x18] sm:$0xf]
      %v1304 = vld [vmem:[#allocation6 + $0x1c] sm:$0xf]
      %v1305 = vld [vmem:[#allocation6 + $0x20] sm:$0xf]
      %v1306 = vld [vmem:[#allocation6 + $0x24] sm:$0xf]
      %v1307 = vld [vmem:[#allocation6 + $0x28] sm:$0xf]
      %v1308 = vld [vmem:[#allocation6 + $0x2c] sm:$0xf]
      %v1309 = vld [vmem:[#allocation6 + $0x30] sm:$0xf]
      %v1310 = vld [vmem:[#allocation6 + $0x34] sm:$0xf]
      %v1311 = vld [vmem:[#allocation6 + $0x38] sm:$0xf]
      %v1312 = vld [vmem:[#allocation6 + $0x3c] sm:$0xf]
      %v1313 = vunpack.c.l.bf16 %v1297
      %v1314 = vunpack.c.l.bf16 %v1298
      %v1315 = vunpack.c.l.bf16 %v1299
      %v1316 = vunpack.c.l.bf16 %v1300
      %v1317 = vunpack.c.l.bf16 %v1301
      %v1318 = vunpack.c.l.bf16 %v1302
      %v1319 = vunpack.c.l.bf16 %v1303
      %v1320 = vunpack.c.l.bf16 %v1304
      %v1321 = vunpack.c.l.bf16 %v1305
      %v1322 = vunpack.c.l.bf16 %v1306
      %v1323 = vunpack.c.l.bf16 %v1307
      %v1324 = vunpack.c.l.bf16 %v1308
      %v1325 = vunpack.c.l.bf16 %v1309
      %v1326 = vunpack.c.l.bf16 %v1310
      %v1327 = vunpack.c.l.bf16 %v1311
      %v1328 = vunpack.c.l.bf16 %v1312
      %v1329 = vld [vmem:[%s2] sm:$0x1]
      %v1330 = vunpack.c.l.bf16 %v1329
      %v1331 = vperm.slane %v1330, 0
      %1332 = vmatpush.msra.mxu0 %v1328
      %1333 = vmatpush.msra.mxu0 %v1327
      %1334 = vmatpush.msra.mxu0 %v1326
      %1335 = vmatpush.msra.mxu0 %v1325
      %1336 = vmatpush.msra.mxu0 %v1324
      %1337 = vmatpush.msra.mxu0 %v1323
      %1338 = vmatpush.msra.mxu0 %v1322
      %1339 = vmatpush.msra.mxu0 %v1321
      %1340 = vmatpush.msra.mxu0 %v1320
      %1341 = vmatpush.msra.mxu0 %v1319
      %1342 = vmatpush.msra.mxu0 %v1318
      %1343 = vmatpush.msra.mxu0 %v1317
      %1344 = vmatpush.msra.mxu0 %v1316
      %1345 = vmatpush.msra.mxu0 %v1315
      %1346 = vmatpush.msra.mxu0 %v1314
      %1347 = vmatpush.msra.mxu0 %v1313
      %1348 = vmatmul.f32.gmra.mxu0 %v1296
      %v1349 = vpop.f32.mrf.mxu0
      %v1350 = vadd.f32 %v1331, %v1349
      %1351 = vdwg.mxu0
      %v1352 = vmax.f32 %v1350, 0.0
      %v1353 = vld [vmem:[#allocation8] sm:$0xf]
      %v1354 = vld [vmem:[#allocation8 + $0x4] sm:$0xf]
      %v1355 = vld [vmem:[#allocation8 + $0x8] sm:$0xf]
      %v1356 = vld [vmem:[#allocation8 + $0xc] sm:$0xf]
      %v1357 = vld [vmem:[#allocation8 + $0x10] sm:$0xf]
      %v1358 = vld [vmem:[#allocation8 + $0x14] sm:$0xf]
      %v1359 = vld [vmem:[#allocation8 + $0x18] sm:$0xf]
      %v1360 = vld [vmem:[#allocation8 + $0x1c] sm:$0xf]
      %v1361 = vld [vmem:[#allocation8 + $0x20] sm:$0xf]
      %v1362 = vld [vmem:[#allocation8 + $0x24] sm:$0xf]
      %v1363 = vld [vmem:[#allocation8 + $0x28] sm:$0xf]
      %v1364 = vld [vmem:[#allocation8 + $0x2c] sm:$0xf]
      %v1365 = vld [vmem:[#allocation8 + $0x30] sm:$0xf]
      %v1366 = vld [vmem:[#allocation8 + $0x34] sm:$0xf]
      %v1367 = vld [vmem:[#allocation8 + $0x38] sm:$0xf]
      %v1368 = vld [vmem:[#allocation8 + $0x3c] sm:$0xf]
      %v1369 = vunpack.c.l.bf16 %v1353
      %v1370 = vunpack.c.l.bf16 %v1354
      %v1371 = vunpack.c.l.bf16 %v1355
      %v1372 = vunpack.c.l.bf16 %v1356
      %v1373 = vunpack.c.l.bf16 %v1357
      %v1374 = vunpack.c.l.bf16 %v1358
      %v1375 = vunpack.c.l.bf16 %v1359
      %v1376 = vunpack.c.l.bf16 %v1360
      %v1377 = vunpack.c.l.bf16 %v1361
      %v1378 = vunpack.c.l.bf16 %v1362
      %v1379 = vunpack.c.l.bf16 %v1363
      %v1380 = vunpack.c.l.bf16 %v1364
      %v1381 = vunpack.c.l.bf16 %v1365
      %v1382 = vunpack.c.l.bf16 %v1366
      %v1383 = vunpack.c.l.bf16 %v1367
      %v1384 = vunpack.c.l.bf16 %v1368
      %v1385 = vld [vmem:[%s4] sm:$0x1]
      %v1386 = vunpack.c.l.bf16 %v1385
      %v1387 = vperm.slane %v1386, 0
      %1388 = vmatpush.msra.mxu0 %v1384
      %1389 = vmatpush.msra.mxu0 %v1383
      %1390 = vmatpush.msra.mxu0 %v1382
      %1391 = vmatpush.msra.mxu0 %v1381
      %1392 = vmatpush.msra.mxu0 %v1380
      %1393 = vmatpush.msra.mxu0 %v1379
      %1394 = vmatpush.msra.mxu0 %v1378
      %1395 = vmatpush.msra.mxu0 %v1377
      %1396 = vmatpush.msra.mxu0 %v1376
      %1397 = vmatpush.msra.mxu0 %v1375
      %1398 = vmatpush.msra.mxu0 %v1374
      %1399 = vmatpush.msra.mxu0 %v1373
      %1400 = vmatpush.msra.mxu0 %v1372
      %1401 = vmatpush.msra.mxu0 %v1371
      %1402 = vmatpush.msra.mxu0 %v1370
      %1403 = vmatpush.msra.mxu0 %v1369
      %1404 = vmatmul.f32.gmra.mxu0 %v1352
      %v1405 = vpop.f32.mrf.mxu0
      %v1406 = vadd.f32 %v1387, %v1405
      %1407 = vdwg.mxu0
      %1408 = vst [vmem:[#allocation9] sm:$0xff] %v1406
    $region41: #{tpu_custom_call.1} parent=1 // pred_fallthru
      _
    // Predicated region
    $region42: #{tpu_custom_call.1} parent=1 // pred_check
      _
    $region43: #{tpu_custom_call.1} parent=1 // pred_check_branch
      %1410 = sbr.rel (0) target = $region45
    $region44: #{tpu_custom_call.1} parent=1 // pred_region
      %1412 = vsyncadd [#allocation5], 0
      %s1414 = sshll.u32 [#allocation9], 4
      %s1415 = int_to_ptr.vmem [resolvable:$true] %s1414
      %s1416 = sshll.u32 %s5, 4
      %s1417 = int_to_ptr.hbm [resolvable:$true] %s1416
      %1419 = dma.vmem_to_hbm [thread:$0]  %s1415, 128, %s1417, [#allocation5]
    $region45: #{tpu_custom_call.1} parent=1 // pred_fallthru
      _
    // Predicated region
    $region46: #{tpu_custom_call.1} parent=1 // pred_check
      _
    $region47: #{tpu_custom_call.1} parent=1 // pred_check_branch
      %1421 = sbr.rel (0) target = $region49
    $region48: #{tpu_custom_call.1} parent=1 // pred_region
      %1423 = dma.done [#allocation5], 128
    $region49: #{tpu_custom_call.1} parent=1 // pred_fallthru
      _
    %1424 = vsyncpa [#allocation4], 1
    %1425 = vsyncpa [#allocation7], 1
    %1426 = vsyncpa [#allocation5], 1

</llo_original>
